<compile_context>
chip_gen: v6e
topology: v6e:2x2x1
jax: 0.10.0
libtpu: 0.0.40
codegen_flags: <defaults>
</compile_context>

<pallas_src>
import jax
import jax.numpy as jnp
from jax.experimental import pallas as pl
from jax.experimental.pallas import tpu as pltpu


def _round_up(x: int, m: int) -> int:
    return ((x + m - 1) // m) * m


def _pick_batch_tile(batch: int) -> int:
    # Prefer >= 2 sublane-aligned tiles (v7x has 2 TensorCores per chip).
    for t in (256, 128, 64, 32, 16, 8):
        if batch % t == 0 and batch // t >= 2:
            return t
    for t in (256, 128, 64, 32, 16, 8):
        if batch % t == 0:
            return t
    return batch  # small/odd batch: full-dim block is always legal


def _pick_vocab_tile(vocab: int, emb: int, itemsize: int) -> int:
    # Target ~2 MiB per table tile (double-buffered by the pipeline),
    # sublane-aligned (multiple of 8), capped at 2048 rows.
    max_rows = max(8, ((2 * 1024 * 1024) // max(1, emb * itemsize)) // 8 * 8)
    return max(8, min(_round_up(vocab, 8), max_rows, 2048))


def word_ave_forward(text, embed_table, w, b, *, emb_dtype=jnp.float32):
    """Fused embedding-lookup + mean-over-seq + linear.

    text:        (S, B) integer token ids
    embed_table: (V, E) embedding weights
    w:           (O, E) nn.Linear weight
    b:           (O,)   nn.Linear bias
    returns:     (B, O) float32
    """
    S, B = text.shape
    V, E = embed_table.shape
    O = w.shape[0]

    itemsize = jnp.dtype(emb_dtype).itemsize

    tB = _pick_batch_tile(B)
    n_btiles = B // tB

    tV = _pick_vocab_tile(V, E, itemsize)
    V_pad = _round_up(V, tV)
    n_vtiles = V_pad // tV

    O_pad = max(_round_up(O, 128), 128)   # lane-dense output / weight / bias

    # (B, S) ids: only the current batch tile's rows stream through VMEM, long
    # (seq) axis last.  Zero-pad the vocab dim of the table; padded rows are
    # never matched by any token id, so they contribute nothing.
    text_bs = jnp.transpose(text.astype(jnp.int32))                       # (B, S)
    tab = jnp.zeros((V_pad, E), emb_dtype).at[:V].set(
        embed_table.astype(emb_dtype))                                    # (V_pad, E)
    w_p = jnp.zeros((E, O_pad), jnp.float32).at[:, :O].set(
        jnp.asarray(w, jnp.float32).T)                                    # (E, O_pad)
    b_p = jnp.zeros((1, O_pad), jnp.float32).at[0, :O].set(
        jnp.asarray(b, jnp.float32))                                      # (1, O_pad)

    inv_s = 1.0 / float(S)

    # Bound the (tB, s_chunk, tV) one-hot intermediate to ~512 KiB of f32.
    s_chunk = max(1, min(S, (512 * 1024 // 4) // max(1, tB * tV)))

    def kernel(text_ref, tab_ref, w_ref, b_ref, o_ref, acc_ref):
        v = pl.program_id(1)

        @pl.when(v == 0)
        def _():
            acc_ref[...] = jnp.zeros_like(acc_ref)

        # One-hot token counts for this vocab tile: counts[b, j] = #{s : id==v*tV+j}.
        v_ids = v * tV + jax.lax.broadcasted_iota(jnp.int32, (1, 1, tV), 2)
        counts = jnp.zeros((tB, tV), jnp.float32)
        for s0 in range(0, S, s_chunk):                     # static unroll, bounded
            sc = min(s_chunk, S - s0)
            toks = text_ref[:, s0:s0 + sc]                  # (tB, sc) int32
            onehot = (toks[:, :, None] == v_ids).astype(jnp.float32)  # (tB, sc, tV)
            counts = counts + jnp.sum(onehot, axis=1)

        tab_blk = tab_ref[...]                              # (tV, E)
        acc_ref[...] += jnp.dot(counts.astype(tab_blk.dtype), tab_blk,
                                preferred_element_type=jnp.float32)

        @pl.when(v == pl.num_programs(1) - 1)
        def _():
            pooled = acc_ref[...] * inv_s                   # mean over sequence
            out = jnp.dot(pooled, w_ref[...],
                          preferred_element_type=jnp.float32)
            o_ref[...] = (out + b_ref[...]).astype(o_ref.dtype)

    def _const_spec(shape):
        # Constant across the grid -> single-buffer it if the API allows.
        index_map = lambda i, v: (0, 0)
        try:
            return pl.BlockSpec(shape, index_map,
                                pipeline_mode=pl.Buffered(buffer_count=1))
        except Exception:  # older API without pipeline_mode / Buffered(1)
            return pl.BlockSpec(shape, index_map)

    # Rough VMEM footprint -> explicit (v7x-safe) limit.
    vmem_need = (
        2 * (tB * S * 4 + tV * E * itemsize)        # double-buffered streamed inputs
        + (E * O_pad + O_pad) * 4                   # constant weight / bias
        + tB * E * 4                                # f32 accumulator
        + 2 * tB * O_pad * 4                        # output block
        + (tB * s_chunk * tV + tB * tV) * 4         # one-hot working set slack
    )
    vmem_limit = int(min(48 * 1024 * 1024, max(16 * 1024 * 1024, 4 * vmem_need)))

    cost = pl.CostEstimate(
        flops=2 * B * V_pad * E + 2 * B * E * O_pad + B * S * V_pad,
        transcendentals=0,
        bytes_accessed=(n_btiles * V_pad * E * itemsize   # table once per batch tile
                        + B * S * 4                       # token ids
                        + (E * O_pad + O_pad) * 4         # weight + bias
                        + B * O_pad * 4),                 # output
    )

    out = pl.pallas_call(
        kernel,
        out_shape=jax.ShapeDtypeStruct((B, O_pad), jnp.float32),
        grid_spec=pltpu.PrefetchScalarGridSpec(
            num_scalar_prefetch=0,
            grid=(n_btiles, n_vtiles),                      # vocab reduction last
            in_specs=[
                pl.BlockSpec((tB, S), lambda i, v: (i, 0)),   # token ids
                pl.BlockSpec((tV, E), lambda i, v: (v, 0)),   # table tile
                _const_spec((E, O_pad)),                      # linear weight (E, O_pad)
                _const_spec((1, O_pad)),                      # bias
            ],
            out_specs=pl.BlockSpec((tB, O_pad), lambda i, v: (i, 0)),
            scratch_shapes=[pltpu.VMEM((tB, E), jnp.float32)],
        ),
        compiler_params=pltpu.CompilerParams(
            dimension_semantics=("parallel", "arbitrary"),
            vmem_limit_bytes=vmem_limit,
        ),
        cost_estimate=cost,
    )(text_bs, tab, w_p, b_p)

    return out[:, :O]


if __name__ == "__main__":
    # Small, deterministic config consistent with the module's __init__.
    vocab_size = 50
    embedding_size = 32
    output_size = 8
    pad_idx = 0
    seq_len = 8
    batch = 2

    key = jax.random.PRNGKey(0)
    k_emb, k_w, k_b, k_txt = jax.random.split(key, 4)

    # nn.Embedding: N(0, 1) init, padding_idx row zeroed.
    embed_table = jax.random.normal(k_emb, (vocab_size, embedding_size),
                                    dtype=jnp.float32)
    embed_table = embed_table.at[pad_idx].set(0.0)

    # nn.Linear: uniform(-1/sqrt(in), 1/sqrt(in)) init.
    bound = 1.0 / (embedding_size ** 0.5)
    w = jax.random.uniform(k_w, (output_size, embedding_size),
                           minval=-bound, maxval=bound, dtype=jnp.float32)
    b = jax.random.uniform(k_b, (output_size,),
                           minval=-bound, maxval=bound, dtype=jnp.float32)

    # text: (seq_len, batch) token ids (torchtext-style layout).
    text = jax.random.randint(k_txt, (seq_len, batch), 0, vocab_size,
                              dtype=jnp.int32)

    out = word_ave_forward(text, embed_table, w, b)
    out = jax.block_until_ready(out)

    # Pure-JAX reference (fp32 table == PyTorch parity mode).
    gathered = jnp.take(embed_table, text, axis=0)        # (S, B, E)
    pooled_ref = jnp.mean(gathered, axis=0)                # (B, E)
    ref = pooled_ref @ w.T + b                             # (B, O)

    assert out.shape == (batch, output_size), out.shape
    # Tolerance covers MXU default-precision matmul passes on all generations.
    assert jnp.allclose(out, ref, atol=1e-2, rtol=1e-2), (out, ref)

    print("KERNEL_OK")
</pallas_src>

<mosaic_0001>
module attributes {stable_mosaic.version = 11 : i64} {
  func.func @kernel(%arg0: i32, %arg1: i32, %arg2: memref<2x8xi32, #tpu.memory_space<vmem>>, %arg3: memref<56x32xf32, #tpu.memory_space<vmem>>, %arg4: memref<32x128xf32, #tpu.memory_space<vmem>>, %arg5: memref<1x128xf32, #tpu.memory_space<vmem>>, %arg6: memref<2x128xf32, #tpu.memory_space<vmem>>, %arg7: memref<2x32xf32, #tpu.memory_space<vmem>>) attributes {dimension_semantics = [#tpu.dimension_semantics<parallel>, #tpu.dimension_semantics<arbitrary>], iteration_bounds = array<i64: 1, 1>, scalar_prefetch = 0 : i64, scratch_operands = 1 : i64, tpu.core_type = #tpu.core_type<tc>, window_params = [{transform_indices = @transform_0, window_bounds = array<i64: 2, 8>}, {transform_indices = @transform_1, window_bounds = array<i64: 56, 32>}, {pipeline_mode = #tpu.pipeline_mode<synchronous>, transform_indices = @transform_2, window_bounds = array<i64: 32, 128>}, {pipeline_mode = #tpu.pipeline_mode<synchronous>, transform_indices = @transform_3, window_bounds = array<i64: 1, 128>}, {transform_indices = @transform_4, window_bounds = array<i64: 2, 128>}]} {
    %c0_i32 = arith.constant 0 : i32
    %0 = arith.cmpi eq, %arg1, %c0_i32 : i32
    %1 = arith.extui %0 : i1 to i32
    %c0_i32_0 = arith.constant 0 : i32
    %2 = arith.cmpi ne, %1, %c0_i32_0 : i32
    scf.if %2 {
      %cst_12 = arith.constant 0.000000e+00 : f32
      %25 = vector.broadcast %cst_12 : f32 to vector<2x32xf32>
      %c0_13 = arith.constant 0 : index
      %c0_14 = arith.constant 0 : index
      %26 = vector.load %arg7[%c0_13, %c0_14] : memref<2x32xf32, #tpu.memory_space<vmem>>, vector<2x32xf32>
      tpu.vector_store %arg7[%c0_13, %c0_14], %25 {strides = array<i32>} : memref<2x32xf32, #tpu.memory_space<vmem>>, vector<2x32xf32>,
    } else {
    }
    %c56_i32 = arith.constant 56 : i32
    %3 = arith.muli %arg1, %c56_i32 : i32
    %4 = tpu.iota {dimensions = array<i32: 2>} : vector<1x1x56xi32>
    %5 = vector.broadcast %3 : i32 to vector<1x1x56xi32>
    %6 = arith.addi %5, %4 : vector<1x1x56xi32>
    %cst = arith.constant 0.000000e+00 : f32
    %7 = vector.broadcast %cst : f32 to vector<2x56xf32>
    %c0 = arith.constant 0 : index
    %c0_1 = arith.constant 0 : index
    %8 = vector.load %arg2[%c0, %c0_1] : memref<2x8xi32, #tpu.memory_space<vmem>>, vector<2x8xi32>
    %9 = vector.shape_cast %8 : vector<2x8xi32> to vector<2x8x1xi32>
    %10 = vector.broadcast %9 : vector<2x8x1xi32> to vector<2x8x56xi32>
    %11 = vector.broadcast %6 : vector<1x1x56xi32> to vector<2x8x56xi32>
    %12 = arith.cmpi eq, %10, %11 : vector<2x8x56xi32>
    %13 = arith.extui %12 : vector<2x8x56xi1> to vector<2x8x56xi32>
    %14 = arith.sitofp %13 : vector<2x8x56xi32> to vector<2x8x56xf32>
    %cst_2 = arith.constant dense<0.000000e+00> : vector<2x56xf32>
    %15 = vector.multi_reduction <add>, %14, %cst_2 [1] : vector<2x8x56xf32> to vector<2x56xf32>
    %16 = arith.addf %7, %15 : vector<2x56xf32>
    %c0_3 = arith.constant 0 : index
    %c0_4 = arith.constant 0 : index
    %17 = vector.load %arg3[%c0_3, %c0_4] : memref<56x32xf32, #tpu.memory_space<vmem>>, vector<56x32xf32>
    %c0_5 = arith.constant 0 : index
    %c0_6 = arith.constant 0 : index
    %18 = vector.load %arg7[%c0_5, %c0_6] : memref<2x32xf32, #tpu.memory_space<vmem>>, vector<2x32xf32>
    %cst_7 = arith.constant dense<0.000000e+00> : vector<2x32xf32>
    %19 = tpu.matmul %16, %17, %cst_7 {dimension_numbers = #tpu.dot_dimension_numbers<[1], [0], [0], [1], [0, 0, 1, 1], [], []>} : vector<2x56xf32>, vector<56x32xf32>, vector<2x32xf32> -> vector<2x32xf32>
    %20 = arith.addf %18, %19 : vector<2x32xf32>
    %c0_8 = arith.constant 0 : index
    %c0_9 = arith.constant 0 : index
    %21 = vector.load %arg7[%c0_8, %c0_9] : memref<2x32xf32, #tpu.memory_space<vmem>>, vector<2x32xf32>
    tpu.vector_store %arg7[%c0_8, %c0_9], %20 {strides = array<i32>} : memref<2x32xf32, #tpu.memory_space<vmem>>, vector<2x32xf32>,
    %c0_i32_10 = arith.constant 0 : i32
    %22 = arith.cmpi eq, %arg1, %c0_i32_10 : i32
    %23 = arith.extui %22 : i1 to i32
    %c0_i32_11 = arith.constant 0 : i32
    %24 = arith.cmpi ne, %23, %c0_i32_11 : i32
    scf.if %24 {
      %c0_12 = arith.constant 0 : index
      %c0_13 = arith.constant 0 : index
      %25 = vector.load %arg7[%c0_12, %c0_13] : memref<2x32xf32, #tpu.memory_space<vmem>>, vector<2x32xf32>
      %cst_14 = arith.constant 1.250000e-01 : f32
      %26 = vector.broadcast %cst_14 : f32 to vector<2x32xf32>
      %27 = arith.mulf %25, %26 : vector<2x32xf32>
      %c0_15 = arith.constant 0 : index
      %c0_16 = arith.constant 0 : index
      %28 = vector.load %arg4[%c0_15, %c0_16] : memref<32x128xf32, #tpu.memory_space<vmem>>, vector<32x128xf32>
      %cst_17 = arith.constant dense<0.000000e+00> : vector<2x128xf32>
      %29 = tpu.matmul %27, %28, %cst_17 {dimension_numbers = #tpu.dot_dimension_numbers<[1], [0], [0], [1], [0, 0, 1, 1], [], []>} : vector<2x32xf32>, vector<32x128xf32>, vector<2x128xf32> -> vector<2x128xf32>
      %c0_18 = arith.constant 0 : index
      %c0_19 = arith.constant 0 : index
      %30 = vector.load %arg5[%c0_18, %c0_19] : memref<1x128xf32, #tpu.memory_space<vmem>>, vector<1x128xf32>
      %31 = vector.broadcast %30 : vector<1x128xf32> to vector<2x128xf32>
      %32 = arith.addf %29, %31 : vector<2x128xf32>
      %c0_20 = arith.constant 0 : index
      %c0_21 = arith.constant 0 : index
      %33 = vector.load %arg6[%c0_20, %c0_21] : memref<2x128xf32, #tpu.memory_space<vmem>>, vector<2x128xf32>
      tpu.vector_store %arg6[%c0_20, %c0_21], %32 {strides = array<i32>} : memref<2x128xf32, #tpu.memory_space<vmem>>, vector<2x128xf32>,
    } else {
    }
    return
  }
  func.func @transform_0(%arg0: i32, %arg1: i32) -> (i32, i32) {
    %c0_i32 = arith.constant 0 : i32
    %c0_i32_0 = arith.constant 0 : i32
    return %arg0, %c0_i32 : i32, i32
  }
  func.func @transform_1(%arg0: i32, %arg1: i32) -> (i32, i32) {
    %c0_i32 = arith.constant 0 : i32
    %c0_i32_0 = arith.constant 0 : i32
    return %arg1, %c0_i32 : i32, i32
  }
  func.func @transform_2(%arg0: i32, %arg1: i32) -> (i32, i32) {
    %c0_i32 = arith.constant 0 : i32
    %c0_i32_0 = arith.constant 0 : i32
    %c0_i32_1 = arith.constant 0 : i32
    return %c0_i32, %c0_i32_0 : i32, i32
  }
  func.func @transform_3(%arg0: i32, %arg1: i32) -> (i32, i32) {
    %c0_i32 = arith.constant 0 : i32
    %c0_i32_0 = arith.constant 0 : i32
    %c0_i32_1 = arith.constant 0 : i32
    return %c0_i32, %c0_i32_0 : i32, i32
  }
  func.func @transform_4(%arg0: i32, %arg1: i32) -> (i32, i32) {
    %c0_i32 = arith.constant 0 : i32
    %c0_i32_0 = arith.constant 0 : i32
    return %arg0, %c0_i32 : i32, i32
  }
}

</mosaic_0001>

<llo_original>
// kernel: tpu_custom_call.1
$region0: #{tpu_custom_call.1}
  #allocation0 [shape = 'u32[]', space=smem, size = 0x4, offset = 0x4, fixed_abs, tag = 'smem constant byte address 0x4 - core index']
  #allocation1 [shape = 'u32[144,128]{1,0:T(1,128)}', space=vmem, size = 0x12000, scoped, tag = 'internal scratch']
  #allocation2 [shape = 'f32[2,32]{1,0:T(2,128)}', space=vmem, size = 0x400, scoped, tag = 'scratch operand']
  %s0 = inlined_call_operand.vmem [shape: s32[2,8], index: 0, kind: input, shape index: {}]
  %s1 = inlined_call_operand.vmem [shape: f32[56,32], index: 1, kind: input, shape index: {}]
  %s2 = inlined_call_operand.vmem [shape: f32[32,128], index: 2, kind: input, shape index: {}]
  %s3 = inlined_call_operand.vmem [shape: f32[1,128], index: 3, kind: input, shape index: {}]
  %s4 = inlined_call_operand.hbm [shape: f32[2,128], index: 4, kind: output, shape index: {}]
  %s5 = sld [smem:[#allocation0]]
  $region34: #{tpu_custom_call.1} parent=0
    _
  %s7 = ssub.s32 1, %s5
  %s8 = scalar_select 0, %s7, %s5
  $region1: #{tpu_custom_call.1} parent=0
    #allocation3 [shape = 'u8[1024]{0}', space=vmem, size = 0x400, scoped, tag = 'output window, operand 0, single buffered']
    #allocation4 [shape = 's32[1]{0}', space=sflag, size = 0x4, scoped, tag = 'scoped memory for tpu_custom_call.1']
    %9 = vsyncpa [#allocation4], 0
    // Predicated region
    $region2: #{tpu_custom_call.1} parent=1 // pred_check
      _
    $region3: #{tpu_custom_call.1} parent=1 // pred_check_branch
      %11 = sbr.rel (0) target = $region5
    $region4: #{tpu_custom_call.1} parent=1 // pred_region
      _
    $region5: #{tpu_custom_call.1} parent=1 // pred_fallthru
      _
    // Predicated region
    $region6: #{tpu_custom_call.1} parent=1 // pred_check
      _
    $region7: #{tpu_custom_call.1} parent=1 // pred_check_branch
      %13 = sbr.rel (0) target = $region9
    $region8: #{tpu_custom_call.1} parent=1 // pred_region
      _
    $region9: #{tpu_custom_call.1} parent=1 // pred_fallthru
      _
    // Predicated region
    $region10: #{tpu_custom_call.1} parent=1 // pred_check
      _
    $region11: #{tpu_custom_call.1} parent=1 // pred_check_branch
      %15 = sbr.rel (0) target = $region13
    $region12: #{tpu_custom_call.1} parent=1 // pred_region
      _
    $region13: #{tpu_custom_call.1} parent=1 // pred_fallthru
      _
    // Predicated region
    $region14: #{tpu_custom_call.1} parent=1 // pred_check
      _
    $region15: #{tpu_custom_call.1} parent=1 // pred_check_branch
      %17 = sbr.rel (0) target = $region17
    $region16: #{tpu_custom_call.1} parent=1 // pred_region
      _
    $region17: #{tpu_custom_call.1} parent=1 // pred_fallthru
      _
    %p18 = scmp.eq.s32.totalorder 0, 0
    // Predicated region
    $region18: #{tpu_custom_call.1} parent=1 // pred_check
      %p19 = pneg %p18
    $region19: #{tpu_custom_call.1} parent=1 // pred_check_branch
      %21 = sbr.rel (%p19) target = $region21
    $region20: #{tpu_custom_call.1} parent=1 // pred_region
      %vm22 = vcmask 254976
      %23 = vst.msk [vmem:[#allocation2] sm:$0x3] %vm22, 0.0
    $region21: #{tpu_custom_call.1} parent=1 // pred_fallthru
      _
    %s24 = smul.u32 0, 56
    %v25 = vlaneseq
    %v26 = vand.u32 %v25, 127
    %v27 = vstv %s24
    %v28 = vadd.s32 %v27, %v26
    %v29 = vld [vmem:[%s0] sm:$0x3]
    %v30 = vlaneseq
    %v31 = vshrl.u32 %v30, 7
    %v32 = vsub.s32 0, %v31
    %v33 = vrot.slane %v29, %v32
    %35 = vbcast.lane.b32.xlu0 %v33, 256
    %v36 = vpop.permute.xlu0 %35
    %v37 = vlaneseq
    %v38 = vshrl.u32 %v37, 7
    %v39 = vsub.s32 1, %v38
    %v40 = vrot.slane %v29, %v39
    %42 = vbcast.lane.b32.xlu0 %v40, 256
    %v43 = vpop.permute.xlu0 %42
    %vm44 = vcmp.eq.s32.totalorder %v36, %v28
    %vm45 = vcmp.eq.s32.totalorder %v43, %v28
    %v46 = vsel %vm44, 1, 0
    %v47 = vsel %vm45, 1, 0
    %v48 = vcvt.s32.f32 %v46
    %v49 = vcvt.s32.f32 %v47
    %vm50 = vcmask 457728
    %v51 = vsel %vm50, %v48, 0.0
    %v52 = vrot.slane %v51, 4
    %v53 = vadd.f32 %v51, %v52
    %v54 = vrot.slane %v53, 2
    %v55 = vadd.f32 %v53, %v54
    %v56 = vrot.slane %v55, 1
    %v57 = vadd.f32 %v55, %v56
    %v58 = vsel %vm50, %v49, 0.0
    %v59 = vrot.slane %v58, 4
    %v60 = vadd.f32 %v58, %v59
    %v61 = vrot.slane %v60, 2
    %v62 = vadd.f32 %v60, %v61
    %v63 = vrot.slane %v62, 1
    %v64 = vadd.f32 %v62, %v63
    %v65 = vadd.f32 %v57, 0.0
    %v66 = vadd.f32 %v64, 0.0
    %v67 = vld [vmem:[%s1] sm:$0xff]
    %v68 = vld [vmem:[%s1 + $0x8] sm:$0xff]
    %v69 = vld [vmem:[%s1 + $0x10] sm:$0xff]
    %v70 = vld [vmem:[%s1 + $0x18] sm:$0xff]
    %v71 = vld [vmem:[%s1 + $0x20] sm:$0xff]
    %v72 = vld [vmem:[%s1 + $0x28] sm:$0xff]
    %v73 = vld [vmem:[%s1 + $0x30] sm:$0xff]
    %v74 = vld [vmem:[#allocation2] sm:$0x3]
    %vm77 = vcmask 1041409
    %v78 = vsel %vm77, %v66, %v65
    %v79 = vsel %vm50, %v78, 0
    %81 = vmatprep.subr.mxu0 0.0
    %82 = vmatpush1.msra.mxu0 0.0
    %83 = vmatprep.subr.mxu0 0.0
    %84 = vmatpush1.msra.mxu0 0.0
    %85 = vmatprep.subr.mxu0 0.0
    %86 = vmatpush1.msra.mxu0 0.0
    %87 = vmatprep.subr.mxu0 0.0
    %88 = vmatpush1.msra.mxu0 0.0
    %89 = vmatprep.subr.mxu0 0.0
    %90 = vmatpush1.msra.mxu0 0.0
    %91 = vmatprep.subr.mxu0 0.0
    %92 = vmatpush1.msra.mxu0 0.0
    %93 = vmatprep.subr.mxu0 0.0
    %94 = vmatpush1.msra.mxu0 0.0
    %95 = vmatprep.subr.mxu0 0.0
    %96 = vmatpush1.msra.mxu0 0.0
    %97 = vmatprep.subr.mxu0 0.0
    %98 = vmatpush1.msra.mxu0 0.0
    %99 = vmatprep.subr.mxu0 0.0
    %100 = vmatpush1.msra.mxu0 %v73
    %101 = vmatprep.subr.mxu0 0.0
    %102 = vmatpush1.msra.mxu0 %v72
    %103 = vmatprep.subr.mxu0 0.0
    %104 = vmatpush1.msra.mxu0 %v71
    %105 = vmatprep.subr.mxu0 0.0
    %106 = vmatpush1.msra.mxu0 %v70
    %107 = vmatprep.subr.mxu0 0.0
    %108 = vmatpush1.msra.mxu0 %v69
    %109 = vmatprep.subr.mxu0 0.0
    %110 = vmatpush1.msra.mxu0 %v68
    %111 = vmatprep.subr.mxu0 0.0
    %112 = vmatpush1.msra.mxu0 %v67
    %113 = vmatprep.subr.mxu0 0.0
    %114 = vmatpush2.msra.mxu0 0.0
    %115 = vmatprep.subr.mxu0 0.0
    %116 = vmatpush2.msra.mxu0 0.0
    %117 = vmatprep.subr.mxu0 0.0
    %118 = vmatpush2.msra.mxu0 0.0
    %119 = vmatprep.subr.mxu0 0.0
    %120 = vmatpush2.msra.mxu0 0.0
    %121 = vmatprep.subr.mxu0 0.0
    %122 = vmatpush2.msra.mxu0 0.0
    %123 = vmatprep.subr.mxu0 0.0
    %124 = vmatpush2.msra.mxu0 0.0
    %125 = vmatprep.subr.mxu0 0.0
    %126 = vmatpush2.msra.mxu0 0.0
    %127 = vmatprep.subr.mxu0 0.0
    %128 = vmatpush2.msra.mxu0 0.0
    %129 = vmatprep.subr.mxu0 0.0
    %130 = vmatpush2.msra.mxu0 0.0
    %131 = vmatprep.subr.mxu0 0.0
    %132 = vmatpush2.msra.mxu0 0.0
    %133 = vmatprep.subr.mxu0 0.0
    %134 = vmatpush2.msra.mxu0 0.0
    %135 = vmatprep.subr.mxu0 0.0
    %136 = vmatpush2.msra.mxu0 0.0
    %137 = vmatprep.subr.mxu0 0.0
    %138 = vmatpush2.msra.mxu0 0.0
    %139 = vmatprep.subr.mxu0 0.0
    %140 = vmatpush2.msra.mxu0 0.0
    %141 = vmatprep.subr.mxu0 0.0
    %142 = vmatpush2.msra.mxu0 0.0
    %143 = vmatprep.subr.mxu0 0.0
    %144 = vmatpush2.msra.mxu0 0.0
    %145 = vmatprep.mubr.f32.mxu0 0.0
    %146 = vmatmul.mubr.f32.gmra.mxu0 %v79
    %v147 = vpop.f32.mrf.mxu0
    %v148 = vadd.f32 0.0, %v147
    %v149 = vpop.f32.mrf.mxu0
    %150 = vdwg.mxu0
    %v151 = vadd.f32 %v74, %v148
    %vm152 = vcmask 254976
    %153 = vst.msk [vmem:[#allocation2] sm:$0x3] %vm152, %v151
    // Predicated region
    $region22: #{tpu_custom_call.1} parent=1 // pred_check
      %p154 = pneg %p18
    $region23: #{tpu_custom_call.1} parent=1 // pred_check_branch
      %156 = sbr.rel (%p154) target = $region25
    $region24: #{tpu_custom_call.1} parent=1 // pred_region
      %v157 = vld [vmem:[#allocation2] sm:$0x3]
      %v158 = vmul.f32 %v157, 0.125
      %v159 = vld [vmem:[%s2] sm:$0xff]
      %v160 = vld [vmem:[%s2 + $0x8] sm:$0xff]
      %v161 = vld [vmem:[%s2 + $0x10] sm:$0xff]
      %v162 = vld [vmem:[%s2 + $0x18] sm:$0xff]
      %v163 = vld [vmem:[%s3] sm:$0x1]
      %v165 = vlaneseq
      %v166 = vshrl.u32 %v165, 7
      %v167 = vsub.s32 0, %v166
      %v168 = vrot.slane %v163, %v167
      %vm170 = vcmask 261120
      %v172 = vsel %vm170, %v158, 0
      %174 = vmatprep.subr.mxu0 0.0
      %175 = vmatpush1.msra.mxu0 0.0
      %176 = vmatprep.subr.mxu0 0.0
      %177 = vmatpush1.msra.mxu0 0.0
      %178 = vmatprep.subr.mxu0 0.0
      %179 = vmatpush1.msra.mxu0 0.0
      %180 = vmatprep.subr.mxu0 0.0
      %181 = vmatpush1.msra.mxu0 0.0
      %182 = vmatprep.subr.mxu0 0.0
      %183 = vmatpush1.msra.mxu0 0.0
      %184 = vmatprep.subr.mxu0 0.0
      %185 = vmatpush1.msra.mxu0 0.0
      %186 = vmatprep.subr.mxu0 0.0
      %187 = vmatpush1.msra.mxu0 0.0
      %188 = vmatprep.subr.mxu0 0.0
      %189 = vmatpush1.msra.mxu0 0.0
      %190 = vmatprep.subr.mxu0 0.0
      %191 = vmatpush1.msra.mxu0 0.0
      %192 = vmatprep.subr.mxu0 0.0
      %193 = vmatpush1.msra.mxu0 0.0
      %194 = vmatprep.subr.mxu0 0.0
      %195 = vmatpush1.msra.mxu0 0.0
      %196 = vmatprep.subr.mxu0 0.0
      %197 = vmatpush1.msra.mxu0 0.0
      %198 = vmatprep.subr.mxu0 0.0
      %199 = vmatpush1.msra.mxu0 %v162
      %200 = vmatprep.subr.mxu0 0.0
      %201 = vmatpush1.msra.mxu0 %v161
      %202 = vmatprep.subr.mxu0 0.0
      %203 = vmatpush1.msra.mxu0 %v160
      %204 = vmatprep.subr.mxu0 0.0
      %205 = vmatpush1.msra.mxu0 %v159
      %206 = vmatprep.subr.mxu0 0.0
      %207 = vmatpush2.msra.mxu0 0.0
      %208 = vmatprep.subr.mxu0 0.0
      %209 = vmatpush2.msra.mxu0 0.0
      %210 = vmatprep.subr.mxu0 0.0
      %211 = vmatpush2.msra.mxu0 0.0
      %212 = vmatprep.subr.mxu0 0.0
      %213 = vmatpush2.msra.mxu0 0.0
      %214 = vmatprep.subr.mxu0 0.0
      %215 = vmatpush2.msra.mxu0 0.0
      %216 = vmatprep.subr.mxu0 0.0
      %217 = vmatpush2.msra.mxu0 0.0
      %218 = vmatprep.subr.mxu0 0.0
      %219 = vmatpush2.msra.mxu0 0.0
      %220 = vmatprep.subr.mxu0 0.0
      %221 = vmatpush2.msra.mxu0 0.0
      %222 = vmatprep.subr.mxu0 0.0
      %223 = vmatpush2.msra.mxu0 0.0
      %224 = vmatprep.subr.mxu0 0.0
      %225 = vmatpush2.msra.mxu0 0.0
      %226 = vmatprep.subr.mxu0 0.0
      %227 = vmatpush2.msra.mxu0 0.0
      %228 = vmatprep.subr.mxu0 0.0
      %229 = vmatpush2.msra.mxu0 0.0
      %230 = vmatprep.subr.mxu0 0.0
      %231 = vmatpush2.msra.mxu0 0.0
      %232 = vmatprep.subr.mxu0 0.0
      %233 = vmatpush2.msra.mxu0 0.0
      %234 = vmatprep.subr.mxu0 0.0
      %235 = vmatpush2.msra.mxu0 0.0
      %236 = vmatprep.subr.mxu0 0.0
      %237 = vmatpush2.msra.mxu0 0.0
      %238 = vmatprep.mubr.f32.mxu0 0.0
      %239 = vmatmul.mubr.f32.gmra.mxu0 %v172
      %v240 = vpop.f32.mrf.mxu0
      %v241 = vadd.f32 %v168, %v240
      %v242 = vpop.f32.mrf.mxu0
      %243 = vdwg.mxu0
      %244 = vst [vmem:[#allocation3] sm:$0x3] %v241
    $region25: #{tpu_custom_call.1} parent=1 // pred_fallthru
      _
    // Predicated region
    $region26: #{tpu_custom_call.1} parent=1 // pred_check
      _
    $region27: #{tpu_custom_call.1} parent=1 // pred_check_branch
      %246 = sbr.rel (0) target = $region29
    $region28: #{tpu_custom_call.1} parent=1 // pred_region
      %s248 = ssub.s32 32, 32
      %249 = vsyncadd [#allocation4], %s248
      %s251 = sshll.u32 [#allocation3], 4
      %s252 = int_to_ptr.vmem [resolvable:$true] %s251
      %254 = dma.vmem_to_hbm [thread:$0]  %s252, 32, %s4, [#allocation4]
    $region29: #{tpu_custom_call.1} parent=1 // pred_fallthru
      _
    // Predicated region
    $region30: #{tpu_custom_call.1} parent=1 // pred_check
      _
    $region31: #{tpu_custom_call.1} parent=1 // pred_check_branch
      %256 = sbr.rel (0) target = $region33
    $region32: #{tpu_custom_call.1} parent=1 // pred_region
      %257 = dma.done [#allocation4], 32
    $region33: #{tpu_custom_call.1} parent=1 // pred_fallthru
      _
    %258 = vsyncpa [#allocation4], 1

</llo_original>
